<compile_context>
chip_gen: v7x
topology: tpu7x:2x2x1
jax: 0.10.0
libtpu: 0.0.40
codegen_flags: <defaults>
</compile_context>

<pallas_src>
import jax
import jax.numpy as jnp
from jax.experimental import pallas as pl
from jax.experimental.pallas import tpu as pltpu

_LANES = 128
_TARGET_BLOCK_BYTES = 4 * 1024 * 1024   # ~4 MiB per block
_MIN_GRID_STEPS = 8                     # keep v7x's 2 TCs busy + pipelined
_VMEM_LIMIT_BYTES = 48 << 20            # headroom for 2x(in+out) 4 MiB buffers


def _identity_kernel(x_ref, o_ref):
    o_ref[...] = x_ref[...]


def _round_down(v, m):
    return (v // m) * m


def _round_up(v, m):
    return -(-v // m) * m


def _copy_2d(x2d, *, donate=False):
    """One-pass Pallas copy of a lane-dense (rows, lanes) array."""
    rows, lanes = x2d.shape
    itemsize = max(1, jnp.dtype(x2d.dtype).itemsize)   # guard sub-byte dtypes
    sublane_tile = 8 * max(1, 4 // itemsize)           # f32->8, bf16->16, int8->32

    if rows <= sublane_tile:
        block_rows = rows                              # full-dim block, 1 step
    else:
        # Byte-targeted block size, rounded to the sublane tile.
        target_rows = max(
            sublane_tile,
            _round_down(_TARGET_BLOCK_BYTES // (lanes * itemsize), sublane_tile))
        # Cap block so mid/large tensors keep >= _MIN_GRID_STEPS grid steps
        # (v7x: shard across both TCs and preserve double-buffer overlap).
        per_step_cap = max(
            sublane_tile,
            _round_up(pl.cdiv(rows, _MIN_GRID_STEPS), sublane_tile))
        block_rows = min(target_rows, per_step_cap)
        if block_rows >= rows:
            block_rows = rows                          # single full-dim block

    grid = (pl.cdiv(rows, block_rows),)

    kwargs = {}
    if donate:
        # Write back into the same HBM pages that were read.  Caller must not
        # reuse x2d afterwards.
        kwargs["input_output_aliases"] = {0: 0}

    return pl.pallas_call(
        _identity_kernel,
        out_shape=jax.ShapeDtypeStruct((rows, lanes), x2d.dtype),
        grid=grid,
        in_specs=[pl.BlockSpec((block_rows, lanes), lambda i: (i, 0))],
        out_specs=pl.BlockSpec((block_rows, lanes), lambda i: (i, 0)),
        compiler_params=pltpu.CompilerParams(
            dimension_semantics=("parallel",),
            vmem_limit_bytes=_VMEM_LIMIT_BYTES,
        ),
        **kwargs,
    )(x2d)


def _copy_flat_aligned(flat, *, donate=False):
    """Copy a 1-D array whose length is a multiple of 128."""
    n = flat.shape[0]
    lanes = _LANES
    for cand in (1024, 512, 256):      # wider lane-dense view when it divides
        if n % cand == 0:
            lanes = cand
            break
    out2d = _copy_2d(flat.reshape(n // lanes, lanes), donate=donate)
    return out2d.reshape(n)


def identity_forward(x, *, donate=False):
    """Pallas implementation of nn.Identity().forward(x) for any shape/dtype."""
    orig_shape = x.shape
    n = 1
    for d in orig_shape:
        n *= int(d)
    if n == 0:
        return x

    if n % _LANES == 0:
        # Aligned fast path: metadata-only reshape in, metadata-only reshape out.
        return _copy_flat_aligned(x.reshape(n), donate=donate).reshape(orig_shape)

    # Ragged tail (< 128 trailing elements): kernel over the aligned prefix,
    # XLA carries the tiny tail — no whole-tensor pad/trim round trip.
    flat = x.reshape(n)
    n_aligned = (n // _LANES) * _LANES
    if n_aligned == 0:
        # Fewer than 128 elements: a Pallas copy would cost more than it moves.
        return x
    head = _copy_flat_aligned(flat[:n_aligned])
    out = jnp.concatenate([head, flat[n_aligned:]])
    return out.reshape(orig_shape)


if __name__ == "__main__":
    key = jax.random.PRNGKey(0)
    x = jax.random.normal(key, (2, 4, 16, 16), dtype=jnp.float32)

    out = jax.block_until_ready(identity_forward(x))
    assert out.shape == x.shape, out.shape
    assert out.dtype == x.dtype, out.dtype
    assert bool(jnp.array_equal(out, x)), float(jnp.max(jnp.abs(out - x)))

    # Exercise the ragged-tail fallback path once as well.
    y = jax.random.normal(jax.random.PRNGKey(1), (5, 130), dtype=jnp.float32)
    out_y = jax.block_until_ready(identity_forward(y))
    assert out_y.shape == y.shape
    assert bool(jnp.array_equal(out_y, y))

    print("KERNEL_OK")
</pallas_src>

<mosaic_0001>
module attributes {stable_mosaic.version = 11 : i64} {
  func.func @_identity_kernel(%arg0: i32, %arg1: memref<2x1024xf32, #tpu.memory_space<vmem>>, %arg2: memref<2x1024xf32, #tpu.memory_space<vmem>>) attributes {dimension_semantics = [#tpu.dimension_semantics<parallel>], iteration_bounds = array<i64: 1>, scalar_prefetch = 0 : i64, scratch_operands = 0 : i64, tpu.core_type = #tpu.core_type<tc>, window_params = [{transform_indices = @transform_0, window_bounds = array<i64: 2, 1024>}, {transform_indices = @transform_1, window_bounds = array<i64: 2, 1024>}]} {
    %c0 = arith.constant 0 : index
    %c0_0 = arith.constant 0 : index
    %0 = vector.load %arg1[%c0, %c0_0] : memref<2x1024xf32, #tpu.memory_space<vmem>>, vector<2x1024xf32>
    %c0_1 = arith.constant 0 : index
    %c0_2 = arith.constant 0 : index
    %1 = vector.load %arg2[%c0_1, %c0_2] : memref<2x1024xf32, #tpu.memory_space<vmem>>, vector<2x1024xf32>
    tpu.vector_store %arg2[%c0_1, %c0_2], %0 {strides = array<i32>} : memref<2x1024xf32, #tpu.memory_space<vmem>>, vector<2x1024xf32>,
    return
  }
  func.func @transform_0(%arg0: i32) -> (i32, i32) {
    %c0_i32 = arith.constant 0 : i32
    %c0_i32_0 = arith.constant 0 : i32
    return %arg0, %c0_i32 : i32, i32
  }
  func.func @transform_1(%arg0: i32) -> (i32, i32) {
    %c0_i32 = arith.constant 0 : i32
    %c0_i32_0 = arith.constant 0 : i32
    return %arg0, %c0_i32 : i32, i32
  }
}

</mosaic_0001>

<llo_original>
// kernel: tpu_custom_call.1
$region0: #{tpu_custom_call.1}
  #allocation0 [shape = 'u32[]', space=smem, size = 0x4, offset = 0x4, fixed_abs, tag = 'smem constant byte address 0x4 - core index']
  #allocation1 [shape = 'u32[144,128]{1,0:T(1,128)}', space=vmem, size = 0x12000, scoped, tag = 'internal scratch']
  %s0 = inlined_call_operand.hbm [shape: f32[2,1024], index: 0, kind: input, shape index: {}]
  %s1 = inlined_call_operand.hbm [shape: f32[2,1024], index: 1, kind: output, shape index: {}]
  %s2 = sld [smem:[#allocation0]]
  $region18: #{tpu_custom_call.1} parent=0
    _
  %s4 = ssub.s32 1, %s2
  %s5 = scalar_select 0, %s4, %s2
  $region1: #{tpu_custom_call.1} parent=0
    #allocation2 [shape = 'u8[8192]{0}', space=vmem, size = 0x2000, scoped, tag = 'input window, operand 0, single buffered']
    #allocation3 [shape = 's32[1]{0}', space=sflag, size = 0x4, scoped, tag = 'scoped memory for tpu_custom_call.1']
    #allocation4 [shape = 's32[1]{0}', space=sflag, size = 0x4, scoped, tag = 'scoped memory for tpu_custom_call.1']
    #allocation5 [shape = 'u8[8192]{0}', space=vmem, size = 0x2000, scoped, tag = 'output window, operand 0, single buffered']
    %6 = vsyncpa [#allocation3], 0
    %7 = vsyncpa [#allocation4], 0
    // Predicated region
    $region2: #{tpu_custom_call.1} parent=1 // pred_check
      _
    $region3: #{tpu_custom_call.1} parent=1 // pred_check_branch
      %9 = sbr.rel (0) target = $region5
    $region4: #{tpu_custom_call.1} parent=1 // pred_region
      %s11 = ssub.s32 256, 256
      %12 = vsyncadd [#allocation3], %s11
      %s14 = sshll.u32 [#allocation2], 4
      %s15 = int_to_ptr.vmem [resolvable:$true] %s14
      %17 = dma.hbm_to_vmem [thread:$0]  %s0, 256, %s15, [#allocation3]
    $region5: #{tpu_custom_call.1} parent=1 // pred_fallthru
      _
    // Predicated region
    $region6: #{tpu_custom_call.1} parent=1 // pred_check
      _
    $region7: #{tpu_custom_call.1} parent=1 // pred_check_branch
      %19 = sbr.rel (0) target = $region9
    $region8: #{tpu_custom_call.1} parent=1 // pred_region
      %20 = dma.done [#allocation3], 256
    $region9: #{tpu_custom_call.1} parent=1 // pred_fallthru
      _
    %v21 = vld [vmem:[#allocation2] sm:$0xff]
    %v22 = vld [vmem:[#allocation2 + $0x8] sm:$0xff]
    %23 = vst [vmem:[#allocation5] sm:$0xff] %v21
    %24 = vst [vmem:[#allocation5 + $0x8] sm:$0xff] %v22
    // Predicated region
    $region10: #{tpu_custom_call.1} parent=1 // pred_check
      _
    $region11: #{tpu_custom_call.1} parent=1 // pred_check_branch
      %26 = sbr.rel (0) target = $region13
    $region12: #{tpu_custom_call.1} parent=1 // pred_region
      %s28 = ssub.s32 256, 256
      %29 = vsyncadd [#allocation4], %s28
      %s31 = sshll.u32 [#allocation5], 4
      %s32 = int_to_ptr.vmem [resolvable:$true] %s31
      %34 = dma.vmem_to_hbm [thread:$0]  %s32, 256, %s1, [#allocation4]
    $region13: #{tpu_custom_call.1} parent=1 // pred_fallthru
      _
    // Predicated region
    $region14: #{tpu_custom_call.1} parent=1 // pred_check
      _
    $region15: #{tpu_custom_call.1} parent=1 // pred_check_branch
      %36 = sbr.rel (0) target = $region17
    $region16: #{tpu_custom_call.1} parent=1 // pred_region
      %37 = dma.done [#allocation4], 256
    $region17: #{tpu_custom_call.1} parent=1 // pred_fallthru
      _
    %38 = vsyncpa [#allocation3], 1
    %39 = vsyncpa [#allocation4], 1

</llo_original>
